<compile_context>
chip_gen: v7x
topology: tpu7x:2x2x1
jax: 0.10.0
libtpu: 0.0.40
codegen_flags: <defaults>
</compile_context>

<pallas_src>
import math

import jax
import jax.numpy as jnp
from jax.experimental import pallas as pl
from jax.experimental.pallas import tpu as pltpu

H1 = 400          # logical fc1 width (PyTorch spec)
H2 = 300          # logical fc2 width
H1_PAD = 512      # lane-padded widths (multiples of 128)
H2_PAD = 384


def _critic_kernel(s_ref, a_ref, w1s_ref, w1a_ref, b1_ref, w2_ref, b2_ref,
                   w3_ref, b3_ref, o_ref):
    # fc1 on concat([state, action]) computed as two dots (concat fused away).
    s16 = s_ref[...].astype(jnp.bfloat16)
    a16 = a_ref[...].astype(jnp.bfloat16)
    h1 = jnp.dot(s16, w1s_ref[...], preferred_element_type=jnp.float32)
    h1 = h1 + jnp.dot(a16, w1a_ref[...], preferred_element_type=jnp.float32)
    h1 = jnp.maximum(h1 + b1_ref[...], 0.0)

    # fc2 + relu (bf16 weights, f32 accumulation, f32 bias/ReLU).
    h2 = jnp.dot(h1.astype(jnp.bfloat16), w2_ref[...],
                 preferred_element_type=jnp.float32)
    h2 = jnp.maximum(h2 + b2_ref[...], 0.0)

    # fc3 (output width 1): VPU multiply + lane reduction, skip the MXU.
    q = jnp.sum(h2 * w3_ref[...], axis=-1, keepdims=True) + b3_ref[...]
    o_ref[...] = q.astype(o_ref.dtype)


def critic_forward(state, action, packed_params):
    """state: [B, state_dim] f32, action: [B, action_dim] f32 -> Q: [B, 1] f32."""
    w1s, w1a, b1, w2, b2, w3, b3 = packed_params
    B, S = state.shape
    A = action.shape[1]

    # Batch tile: full batch if small, else 256-row tiles (weights stay
    # resident; tile + double-buffering fits comfortably even in 64 MiB VMEM).
    TB = B if B <= 256 else 256
    grid = (pl.cdiv(B, TB),)

    def row_spec(ncols):
        return pl.BlockSpec((TB, ncols), lambda i: (i, 0))

    def resident_spec(shape):
        # Constant index_map -> DMA'd once, kept VMEM-resident across the grid.
        return pl.BlockSpec(shape, lambda i: (0, 0))

    flops = 2 * B * ((S + A) * H1_PAD + H1_PAD * H2_PAD + H2_PAD)
    bytes_accessed = (
        (w1s.size + w1a.size + w2.size) * 2            # bf16 weights
        + (b1.size + b2.size + w3.size + b3.size) * 4  # f32 biases / fc3 vector
        + (state.size + action.size) * 4               # activations in
        + B * 4                                        # q out
    )

    return pl.pallas_call(
        _critic_kernel,
        out_shape=jax.ShapeDtypeStruct((B, 1), jnp.float32),
        grid=grid,
        in_specs=[
            row_spec(S),
            row_spec(A),
            resident_spec(w1s.shape),
            resident_spec(w1a.shape),
            resident_spec(b1.shape),
            resident_spec(w2.shape),
            resident_spec(b2.shape),
            resident_spec(w3.shape),
            resident_spec(b3.shape),
        ],
        out_specs=row_spec(1),
        compiler_params=pltpu.CompilerParams(
            dimension_semantics=("parallel",)),
        cost_estimate=pl.CostEstimate(
            flops=flops, transcendentals=0, bytes_accessed=bytes_accessed),
    )(state, action, w1s, w1a, b1, w2, b2, w3, b3)


def init_critic_params(key, state_dim, action_dim):
    """torch.nn.Linear-style init (U[-1/sqrt(fan_in), +1/sqrt(fan_in)]), f32, unpadded."""
    def linear(key, fan_in, fan_out):
        kw, kb = jax.random.split(key)
        bound = 1.0 / math.sqrt(fan_in)
        w = jax.random.uniform(kw, (fan_in, fan_out), jnp.float32, -bound, bound)
        b = jax.random.uniform(kb, (fan_out,), jnp.float32, -bound, bound)
        return w, b

    k1, k2, k3 = jax.random.split(key, 3)
    w1, b1 = linear(k1, state_dim + action_dim, H1)
    w2, b2 = linear(k2, H1, H2)
    w3, b3 = linear(k3, H2, 1)
    return (w1, b1, w2, b2, w3, b3)


def pack_critic_params(params, state_dim):
    """Split w1 (fuses the concat), zero-pad hidden widths to lane multiples,
    cast the large weights to bf16 (accumulation stays f32 in-kernel)."""
    w1, b1, w2, b2, w3, b3 = params
    w1p = jnp.zeros((w1.shape[0], H1_PAD), jnp.float32).at[:, :H1].set(w1)
    b1p = jnp.zeros((1, H1_PAD), jnp.float32).at[:, :H1].set(b1)
    w2p = jnp.zeros((H1_PAD, H2_PAD), jnp.float32).at[:H1, :H2].set(w2)
    b2p = jnp.zeros((1, H2_PAD), jnp.float32).at[:, :H2].set(b2)
    w3p = jnp.zeros((1, H2_PAD), jnp.float32).at[:, :H2].set(w3[:, 0])
    b3p = b3.reshape(1, 1)
    w1s = w1p[:state_dim].astype(jnp.bfloat16)
    w1a = w1p[state_dim:].astype(jnp.bfloat16)
    return (w1s, w1a, b1p, w2p.astype(jnp.bfloat16), b2p, w3p, b3p)


def critic_reference_f32(state, action, params):
    """Exact f32 reference matching the PyTorch module."""
    w1, b1, w2, b2, w3, b3 = params
    q = jnp.concatenate([state, action], axis=1)
    q = jax.nn.relu(q @ w1 + b1)
    q = jax.nn.relu(q @ w2 + b2)
    return q @ w3 + b3


def critic_reference_packed(state, action, packed):
    """Matched-precision reference (bf16 weights/activations, f32 accumulation)."""
    w1s, w1a, b1, w2, b2, w3, b3 = packed
    h1 = (jnp.dot(state.astype(jnp.bfloat16), w1s, preferred_element_type=jnp.float32)
          + jnp.dot(action.astype(jnp.bfloat16), w1a, preferred_element_type=jnp.float32))
    h1 = jnp.maximum(h1 + b1, 0.0)
    h2 = jnp.dot(h1.astype(jnp.bfloat16), w2, preferred_element_type=jnp.float32)
    h2 = jnp.maximum(h2 + b2, 0.0)
    return jnp.sum(h2 * w3, axis=-1, keepdims=True) + b3


if __name__ == "__main__":
    state_dim, action_dim, batch = 17, 6, 8

    key = jax.random.PRNGKey(0)
    k_params, k_state, k_action = jax.random.split(key, 3)

    params_f32 = init_critic_params(k_params, state_dim, action_dim)
    packed = pack_critic_params(params_f32, state_dim)

    state = jax.random.normal(k_state, (batch, state_dim), jnp.float32)
    action = jax.random.normal(k_action, (batch, action_dim), jnp.float32)

    q = jax.block_until_ready(critic_forward(state, action, packed))
    q_matched = jax.block_until_ready(critic_reference_packed(state, action, packed))
    q_exact = jax.block_until_ready(critic_reference_f32(state, action, params_f32))

    assert q.shape == (batch, 1), q.shape
    # Matched-precision check (same bf16/f32 path): tight tolerance.
    assert jnp.allclose(q, q_matched, atol=1e-3, rtol=1e-3), (q, q_matched)
    # Semantic check vs the exact f32 PyTorch-equivalent: loose tolerance
    # because the large weights are stored in bf16.
    assert jnp.allclose(q, q_exact, atol=5e-2, rtol=5e-2), (q, q_exact)
    print("KERNEL_OK")
</pallas_src>

<mosaic_0001>
module attributes {stable_mosaic.version = 11 : i64} {
  func.func @_critic_kernel(%arg0: i32, %arg1: memref<8x17xf32, #tpu.memory_space<vmem>>, %arg2: memref<8x6xf32, #tpu.memory_space<vmem>>, %arg3: memref<17x512xbf16, #tpu.memory_space<vmem>>, %arg4: memref<6x512xbf16, #tpu.memory_space<vmem>>, %arg5: memref<1x512xf32, #tpu.memory_space<vmem>>, %arg6: memref<512x384xbf16, #tpu.memory_space<vmem>>, %arg7: memref<1x384xf32, #tpu.memory_space<vmem>>, %arg8: memref<1x384xf32, #tpu.memory_space<vmem>>, %arg9: memref<1x1xf32, #tpu.memory_space<vmem>>, %arg10: memref<8x1xf32, #tpu.memory_space<vmem>>) attributes {dimension_semantics = [#tpu.dimension_semantics<parallel>], iteration_bounds = array<i64: 1>, scalar_prefetch = 0 : i64, scratch_operands = 0 : i64, tpu.core_type = #tpu.core_type<tc>, window_params = [{transform_indices = @transform_0, window_bounds = array<i64: 8, 17>}, {transform_indices = @transform_1, window_bounds = array<i64: 8, 6>}, {pipeline_mode = #tpu.pipeline_mode<synchronous>, transform_indices = @transform_2, window_bounds = array<i64: 17, 512>}, {pipeline_mode = #tpu.pipeline_mode<synchronous>, transform_indices = @transform_3, window_bounds = array<i64: 6, 512>}, {pipeline_mode = #tpu.pipeline_mode<synchronous>, transform_indices = @transform_4, window_bounds = array<i64: 1, 512>}, {pipeline_mode = #tpu.pipeline_mode<synchronous>, transform_indices = @transform_5, window_bounds = array<i64: 512, 384>}, {pipeline_mode = #tpu.pipeline_mode<synchronous>, transform_indices = @transform_6, window_bounds = array<i64: 1, 384>}, {pipeline_mode = #tpu.pipeline_mode<synchronous>, transform_indices = @transform_7, window_bounds = array<i64: 1, 384>}, {pipeline_mode = #tpu.pipeline_mode<synchronous>, transform_indices = @transform_8, window_bounds = array<i64: 1, 1>}, {transform_indices = @transform_9, window_bounds = array<i64: 8, 1>}]} {
    %c0 = arith.constant 0 : index
    %c0_0 = arith.constant 0 : index
    %0 = vector.load %arg1[%c0, %c0_0] : memref<8x17xf32, #tpu.memory_space<vmem>>, vector<8x17xf32>
    %1 = arith.truncf %0 : vector<8x17xf32> to vector<8x17xbf16>
    %c0_1 = arith.constant 0 : index
    %c0_2 = arith.constant 0 : index
    %2 = vector.load %arg2[%c0_1, %c0_2] : memref<8x6xf32, #tpu.memory_space<vmem>>, vector<8x6xf32>
    %3 = arith.truncf %2 : vector<8x6xf32> to vector<8x6xbf16>
    %c0_3 = arith.constant 0 : index
    %c0_4 = arith.constant 0 : index
    %4 = vector.load %arg3[%c0_3, %c0_4] : memref<17x512xbf16, #tpu.memory_space<vmem>>, vector<17x512xbf16>
    %cst = arith.constant dense<0.000000e+00> : vector<8x512xf32>
    %5 = tpu.matmul %1, %4, %cst {dimension_numbers = #tpu.dot_dimension_numbers<[1], [0], [0], [1], [0, 0, 1, 1], [], []>} : vector<8x17xbf16>, vector<17x512xbf16>, vector<8x512xf32> -> vector<8x512xf32>
    %c0_5 = arith.constant 0 : index
    %c0_6 = arith.constant 0 : index
    %6 = vector.load %arg4[%c0_5, %c0_6] : memref<6x512xbf16, #tpu.memory_space<vmem>>, vector<6x512xbf16>
    %cst_7 = arith.constant dense<0.000000e+00> : vector<8x512xf32>
    %7 = tpu.matmul %3, %6, %cst_7 {dimension_numbers = #tpu.dot_dimension_numbers<[1], [0], [0], [1], [0, 0, 1, 1], [], []>} : vector<8x6xbf16>, vector<6x512xbf16>, vector<8x512xf32> -> vector<8x512xf32>
    %8 = arith.addf %5, %7 : vector<8x512xf32>
    %c0_8 = arith.constant 0 : index
    %c0_9 = arith.constant 0 : index
    %9 = vector.load %arg5[%c0_8, %c0_9] : memref<1x512xf32, #tpu.memory_space<vmem>>, vector<1x512xf32>
    %10 = vector.broadcast %9 : vector<1x512xf32> to vector<8x512xf32>
    %11 = arith.addf %8, %10 : vector<8x512xf32>
    %cst_10 = arith.constant 0.000000e+00 : f32
    %12 = vector.broadcast %cst_10 : f32 to vector<8x512xf32>
    %13 = arith.maximumf %11, %12 : vector<8x512xf32>
    %14 = arith.truncf %13 : vector<8x512xf32> to vector<8x512xbf16>
    %c0_11 = arith.constant 0 : index
    %c0_12 = arith.constant 0 : index
    %15 = vector.load %arg6[%c0_11, %c0_12] : memref<512x384xbf16, #tpu.memory_space<vmem>>, vector<512x384xbf16>
    %cst_13 = arith.constant dense<0.000000e+00> : vector<8x384xf32>
    %16 = tpu.matmul %14, %15, %cst_13 {dimension_numbers = #tpu.dot_dimension_numbers<[1], [0], [0], [1], [0, 0, 1, 1], [], []>} : vector<8x512xbf16>, vector<512x384xbf16>, vector<8x384xf32> -> vector<8x384xf32>
    %c0_14 = arith.constant 0 : index
    %c0_15 = arith.constant 0 : index
    %17 = vector.load %arg7[%c0_14, %c0_15] : memref<1x384xf32, #tpu.memory_space<vmem>>, vector<1x384xf32>
    %18 = vector.broadcast %17 : vector<1x384xf32> to vector<8x384xf32>
    %19 = arith.addf %16, %18 : vector<8x384xf32>
    %cst_16 = arith.constant 0.000000e+00 : f32
    %20 = vector.broadcast %cst_16 : f32 to vector<8x384xf32>
    %21 = arith.maximumf %19, %20 : vector<8x384xf32>
    %c0_17 = arith.constant 0 : index
    %c0_18 = arith.constant 0 : index
    %22 = vector.load %arg8[%c0_17, %c0_18] : memref<1x384xf32, #tpu.memory_space<vmem>>, vector<1x384xf32>
    %23 = vector.broadcast %22 : vector<1x384xf32> to vector<8x384xf32>
    %24 = arith.mulf %21, %23 : vector<8x384xf32>
    %cst_19 = arith.constant dense<0.000000e+00> : vector<8xf32>
    %25 = vector.multi_reduction <add>, %24, %cst_19 [1] : vector<8x384xf32> to vector<8xf32>
    %26 = vector.shape_cast %25 : vector<8xf32> to vector<8x1xf32>
    %c0_20 = arith.constant 0 : index
    %c0_21 = arith.constant 0 : index
    %27 = vector.load %arg9[%c0_20, %c0_21] : memref<1x1xf32, #tpu.memory_space<vmem>>, vector<1x1xf32>
    %28 = vector.broadcast %27 : vector<1x1xf32> to vector<8x1xf32>
    %29 = arith.addf %26, %28 : vector<8x1xf32>
    %c0_22 = arith.constant 0 : index
    %c0_23 = arith.constant 0 : index
    %30 = vector.load %arg10[%c0_22, %c0_23] : memref<8x1xf32, #tpu.memory_space<vmem>>, vector<8x1xf32>
    tpu.vector_store %arg10[%c0_22, %c0_23], %29 {strides = array<i32>} : memref<8x1xf32, #tpu.memory_space<vmem>>, vector<8x1xf32>,
    return
  }
  func.func @transform_0(%arg0: i32) -> (i32, i32) {
    %c0_i32 = arith.constant 0 : i32
    %c0_i32_0 = arith.constant 0 : i32
    return %arg0, %c0_i32 : i32, i32
  }
  func.func @transform_1(%arg0: i32) -> (i32, i32) {
    %c0_i32 = arith.constant 0 : i32
    %c0_i32_0 = arith.constant 0 : i32
    return %arg0, %c0_i32 : i32, i32
  }
  func.func @transform_2(%arg0: i32) -> (i32, i32) {
    %c0_i32 = arith.constant 0 : i32
    %c0_i32_0 = arith.constant 0 : i32
    %c0_i32_1 = arith.constant 0 : i32
    return %c0_i32, %c0_i32_0 : i32, i32
  }
  func.func @transform_3(%arg0: i32) -> (i32, i32) {
    %c0_i32 = arith.constant 0 : i32
    %c0_i32_0 = arith.constant 0 : i32
    %c0_i32_1 = arith.constant 0 : i32
    return %c0_i32, %c0_i32_0 : i32, i32
  }
  func.func @transform_4(%arg0: i32) -> (i32, i32) {
    %c0_i32 = arith.constant 0 : i32
    %c0_i32_0 = arith.constant 0 : i32
    %c0_i32_1 = arith.constant 0 : i32
    return %c0_i32, %c0_i32_0 : i32, i32
  }
  func.func @transform_5(%arg0: i32) -> (i32, i32) {
    %c0_i32 = arith.constant 0 : i32
    %c0_i32_0 = arith.constant 0 : i32
    %c0_i32_1 = arith.constant 0 : i32
    return %c0_i32, %c0_i32_0 : i32, i32
  }
  func.func @transform_6(%arg0: i32) -> (i32, i32) {
    %c0_i32 = arith.constant 0 : i32
    %c0_i32_0 = arith.constant 0 : i32
    %c0_i32_1 = arith.constant 0 : i32
    return %c0_i32, %c0_i32_0 : i32, i32
  }
  func.func @transform_7(%arg0: i32) -> (i32, i32) {
    %c0_i32 = arith.constant 0 : i32
    %c0_i32_0 = arith.constant 0 : i32
    %c0_i32_1 = arith.constant 0 : i32
    return %c0_i32, %c0_i32_0 : i32, i32
  }
  func.func @transform_8(%arg0: i32) -> (i32, i32) {
    %c0_i32 = arith.constant 0 : i32
    %c0_i32_0 = arith.constant 0 : i32
    %c0_i32_1 = arith.constant 0 : i32
    return %c0_i32, %c0_i32_0 : i32, i32
  }
  func.func @transform_9(%arg0: i32) -> (i32, i32) {
    %c0_i32 = arith.constant 0 : i32
    %c0_i32_0 = arith.constant 0 : i32
    return %arg0, %c0_i32 : i32, i32
  }
}

</mosaic_0001>

<llo_original>
// kernel: tpu_custom_call.1
$region0: #{tpu_custom_call.1}
  #allocation0 [shape = 'u32[]', space=smem, size = 0x4, offset = 0x4, fixed_abs, tag = 'smem constant byte address 0x4 - core index']
  #allocation1 [shape = 'u32[144,128]{1,0:T(1,128)}', space=vmem, size = 0x12000, scoped, tag = 'internal scratch']
  #allocation2 [shape = 'f32[1,1]{1,0:T(1,128)S(1)}', space=vmem, size = 0x200, scoped, tag = 'scoped memory for tpu_custom_call.1']
  %s0 = inlined_call_operand.hbm [shape: f32[8,17], index: 0, kind: input, shape index: {}]
  %s1 = inlined_call_operand.hbm [shape: f32[8,6], index: 1, kind: input, shape index: {}]
  %s2 = inlined_call_operand.hbm [shape: bf16[17,512], index: 2, kind: input, shape index: {}]
  %s3 = inlined_call_operand.hbm [shape: bf16[6,512], index: 3, kind: input, shape index: {}]
  %s4 = inlined_call_operand.vmem [shape: f32[1,512], index: 4, kind: input, shape index: {}]
  %s5 = inlined_call_operand.hbm [shape: bf16[512,384], index: 5, kind: input, shape index: {}]
  %s6 = inlined_call_operand.vmem [shape: f32[1,384], index: 6, kind: input, shape index: {}]
  %s7 = inlined_call_operand.vmem [shape: f32[1,384], index: 7, kind: input, shape index: {}]
  %s8 = inlined_call_operand.<no memory space> [shape: f32[1,1], index: 8, kind: input, shape index: {}]
  %s9 = inlined_call_operand.vmem [shape: f32[8,1], index: 9, kind: output, shape index: {}]
  %s10 = sld [smem:[#allocation0]]
  $region66: #{tpu_custom_call.1} parent=0
    _
  %s12 = ssub.s32 1, %s10
  %s13 = scalar_select 0, %s12, %s10
  %v14 = vstv %s8
  %15 = vst [vmem:[#allocation2] sm:$0x1] %v14
  $region1: #{tpu_custom_call.1} parent=0
    #allocation3 [shape = 'u8[4096]{0}', space=vmem, size = 0x1000, scoped, tag = 'input window, operand 0, single buffered']
    #allocation4 [shape = 's32[1]{0}', space=sflag, size = 0x4, scoped, tag = 'scoped memory for tpu_custom_call.1']
    #allocation5 [shape = 'u8[4096]{0}', space=vmem, size = 0x1000, scoped, tag = 'input window, operand 1, single buffered']
    #allocation6 [shape = 's32[1]{0}', space=sflag, size = 0x4, scoped, tag = 'scoped memory for tpu_custom_call.1']
    #allocation7 [shape = 'u8[24576]{0}', space=vmem, size = 0x6000, scoped, tag = 'input window, operand 2, single buffered']
    #allocation8 [shape = 'u8[8192]{0}', space=vmem, size = 0x2000, scoped, tag = 'input window, operand 3, single buffered']
    #allocation9 [shape = 's32[1]{0}', space=sflag, size = 0x4, scoped, tag = 'scoped memory for tpu_custom_call.1']
    #allocation10 [shape = 'u8[393216]{0}', space=vmem, size = 0x60000, scoped, tag = 'input window, operand 5, single buffered']
    %16 = vsyncpa [#allocation4], 0
    %17 = vsyncpa [#allocation6], 0
    %18 = vsyncpa [#allocation9], 0
    // Predicated region
    $region2: #{tpu_custom_call.1} parent=1 // pred_check
      _
    $region3: #{tpu_custom_call.1} parent=1 // pred_check_branch
      %20 = sbr.rel (0) target = $region5
    $region4: #{tpu_custom_call.1} parent=1 // pred_region
      %s22 = ssub.s32 128, 128
      %23 = vsyncadd [#allocation4], %s22
      %s25 = sshll.u32 [#allocation3], 4
      %s26 = int_to_ptr.vmem [resolvable:$true] %s25
      %28 = dma.hbm_to_vmem [thread:$0]  %s0, 128, %s26, [#allocation4]
    $region5: #{tpu_custom_call.1} parent=1 // pred_fallthru
      _
    // Predicated region
    $region6: #{tpu_custom_call.1} parent=1 // pred_check
      _
    $region7: #{tpu_custom_call.1} parent=1 // pred_check_branch
      %30 = sbr.rel (0) target = $region9
    $region8: #{tpu_custom_call.1} parent=1 // pred_region
      %s32 = ssub.s32 128, 128
      %33 = vsyncadd [#allocation6], %s32
      %s35 = sshll.u32 [#allocation5], 4
      %s36 = int_to_ptr.vmem [resolvable:$true] %s35
      %38 = dma.hbm_to_vmem [thread:$0]  %s1, 128, %s36, [#allocation6]
    $region9: #{tpu_custom_call.1} parent=1 // pred_fallthru
      _
    // Predicated region
    $region10: #{tpu_custom_call.1} parent=1 // pred_check
      _
    $region11: #{tpu_custom_call.1} parent=1 // pred_check_branch
      %40 = sbr.rel (0) target = $region13
    $region12: #{tpu_custom_call.1} parent=1 // pred_region
      %s42 = ssub.s32 768, 768
      %43 = vsyncadd [#allocation6], %s42
      %s44 = sshll.u32 [#allocation7], 4
      %s45 = int_to_ptr.vmem [resolvable:$true] %s44
      %50 = dma.hbm_to_vmem [thread:$0]  %s2, 768, %s45, [#allocation6], 256, 256, 16
    $region13: #{tpu_custom_call.1} parent=1 // pred_fallthru
      _
    // Predicated region
    $region14: #{tpu_custom_call.1} parent=1 // pred_check
      _
    $region15: #{tpu_custom_call.1} parent=1 // pred_check_branch
      %52 = sbr.rel (0) target = $region17
    $region16: #{tpu_custom_call.1} parent=1 // pred_region
      %s54 = ssub.s32 256, 256
      %55 = vsyncadd [#allocation9], %s54
      %s57 = sshll.u32 [#allocation8], 4
      %s58 = int_to_ptr.vmem [resolvable:$true] %s57
      %60 = dma.hbm_to_vmem [thread:$0]  %s3, 256, %s58, [#allocation9]
    $region17: #{tpu_custom_call.1} parent=1 // pred_fallthru
      _
    // Predicated region
    $region18: #{tpu_custom_call.1} parent=1 // pred_check
      _
    $region19: #{tpu_custom_call.1} parent=1 // pred_check_branch
      %62 = sbr.rel (0) target = $region21
    $region20: #{tpu_custom_call.1} parent=1 // pred_region
      _
    $region21: #{tpu_custom_call.1} parent=1 // pred_fallthru
      _
    // Predicated region
    $region22: #{tpu_custom_call.1} parent=1 // pred_check
      _
    $region23: #{tpu_custom_call.1} parent=1 // pred_check_branch
      %64 = sbr.rel (0) target = $region25
    $region24: #{tpu_custom_call.1} parent=1 // pred_region
      %s66 = ssub.s32 12288, 12288
      %67 = vsyncadd [#allocation9], %s66
      %s68 = sshll.u32 [#allocation10], 4
      %s69 = int_to_ptr.vmem [resolvable:$true] %s68
      %74 = dma.hbm_to_vmem [thread:$0]  %s5, 12288, %s69, [#allocation9], 192, 192, 12
    $region25: #{tpu_custom_call.1} parent=1 // pred_fallthru
      _
    // Predicated region
    $region26: #{tpu_custom_call.1} parent=1 // pred_check
      _
    $region27: #{tpu_custom_call.1} parent=1 // pred_check_branch
      %76 = sbr.rel (0) target = $region29
    $region28: #{tpu_custom_call.1} parent=1 // pred_region
      _
    $region29: #{tpu_custom_call.1} parent=1 // pred_fallthru
      _
    // Predicated region
    $region30: #{tpu_custom_call.1} parent=1 // pred_check
      _
    $region31: #{tpu_custom_call.1} parent=1 // pred_check_branch
      %78 = sbr.rel (0) target = $region33
    $region32: #{tpu_custom_call.1} parent=1 // pred_region
      _
    $region33: #{tpu_custom_call.1} parent=1 // pred_fallthru
      _
    // Predicated region
    $region34: #{tpu_custom_call.1} parent=1 // pred_check
      _
    $region35: #{tpu_custom_call.1} parent=1 // pred_check_branch
      %80 = sbr.rel (0) target = $region37
    $region36: #{tpu_custom_call.1} parent=1 // pred_region
      _
    $region37: #{tpu_custom_call.1} parent=1 // pred_fallthru
      _
    // Predicated region
    $region38: #{tpu_custom_call.1} parent=1 // pred_check
      _
    $region39: #{tpu_custom_call.1} parent=1 // pred_check_branch
      %82 = sbr.rel (0) target = $region41
    $region40: #{tpu_custom_call.1} parent=1 // pred_region
      %83 = dma.done [#allocation4], 128
    $region41: #{tpu_custom_call.1} parent=1 // pred_fallthru
      _
    // Predicated region
    $region42: #{tpu_custom_call.1} parent=1 // pred_check
      _
    $region43: #{tpu_custom_call.1} parent=1 // pred_check_branch
      %85 = sbr.rel (0) target = $region45
    $region44: #{tpu_custom_call.1} parent=1 // pred_region
      %86 = dma.done [#allocation6], 128
    $region45: #{tpu_custom_call.1} parent=1 // pred_fallthru
      _
    // Predicated region
    $region46: #{tpu_custom_call.1} parent=1 // pred_check
      _
    $region47: #{tpu_custom_call.1} parent=1 // pred_check_branch
      %88 = sbr.rel (0) target = $region49
    $region48: #{tpu_custom_call.1} parent=1 // pred_region
      %89 = dma.done [#allocation6], 768
    $region49: #{tpu_custom_call.1} parent=1 // pred_fallthru
      _
    // Predicated region
    $region50: #{tpu_custom_call.1} parent=1 // pred_check
      _
    $region51: #{tpu_custom_call.1} parent=1 // pred_check_branch
      %91 = sbr.rel (0) target = $region53
    $region52: #{tpu_custom_call.1} parent=1 // pred_region
      %92 = dma.done [#allocation9], 256
    $region53: #{tpu_custom_call.1} parent=1 // pred_fallthru
      _
    // Predicated region
    $region54: #{tpu_custom_call.1} parent=1 // pred_check
      _
    $region55: #{tpu_custom_call.1} parent=1 // pred_check_branch
      %94 = sbr.rel (0) target = $region57
    $region56: #{tpu_custom_call.1} parent=1 // pred_region
      %95 = dma.done [#allocation9], 12288
    $region57: #{tpu_custom_call.1} parent=1 // pred_fallthru
      _
    %v97 = vld [vmem:[#allocation3] sm:$0xff]
    %v98 = vpack.c.bf16 %v97, %v97
    %v99 = vld [vmem:[#allocation5] sm:$0xff]
    %v100 = vpack.c.bf16 %v99, %v99
    %v101 = vld [vmem:[#allocation7] sm:$0xff]
    %v102 = vld [vmem:[#allocation7 + $0x8] sm:$0xff]
    %v103 = vld [vmem:[#allocation7 + $0x10] sm:$0xff]
    %v104 = vld [vmem:[#allocation7 + $0x18] sm:$0xff]
    %v105 = vld [vmem:[#allocation7 + $0x20] sm:$0x11]
    %v106 = vld [vmem:[#allocation7 + $0x28] sm:$0x11]
    %v107 = vld [vmem:[#allocation8] sm:$0x77]
    %v108 = vld [vmem:[#allocation8 + $0x8] sm:$0x77]
    %v111 = vunpack.c.l.b16 %v107
    %v112 = vunpack.c.h.b16 %v107
    %v113 = vunpack.c.l.b16 %v108
    %v114 = vunpack.c.h.b16 %v108
    %v115 = vpack.c.b16 %v111, %v111
    %v116 = vpack.c.b16 %v112, %v112
    %v117 = vpack.c.b16 %v113, %v113
    %v118 = vpack.c.b16 %v114, %v114
    %vm119 = vcmask 48128
    %v121 = vsel %vm119, %v100, 0
    %vm123 = vcmask 1042432
    %v125 = vsel %vm123, %v115, 0
    %v128 = vsel %vm123, %v116, 0
    %v131 = vsel %vm123, %v117, 0
    %v134 = vsel %vm123, %v118, 0
    %136 = vmatprep.subr.bf16.mxu0 %v128
    %137 = vmatpush1.bf16.msra.mxu0 %v125
    %138 = vmatprep.subr.bf16.mxu0 0
    %139 = vmatpush1.bf16.msra.mxu0 0
    %140 = vmatprep.subr.bf16.mxu0 0
    %141 = vmatpush1.bf16.msra.mxu0 0
    %142 = vmatprep.subr.bf16.mxu0 0
    %143 = vmatpush1.bf16.msra.mxu0 0
    %144 = vmatprep.subr.bf16.mxu0 0
    %145 = vmatpush1.bf16.msra.mxu0 0
    %146 = vmatprep.subr.bf16.mxu0 0
    %147 = vmatpush1.bf16.msra.mxu0 0
    %148 = vmatprep.subr.bf16.mxu0 0
    %149 = vmatpush1.bf16.msra.mxu0 0
    %150 = vmatprep.subr.bf16.mxu0 0
    %151 = vmatpush1.bf16.msra.mxu0 0
    %152 = vmatprep.subr.bf16.mxu0 0
    %153 = vmatpush1.bf16.msra.mxu0 0
    %154 = vmatprep.subr.bf16.mxu0 0
    %155 = vmatpush1.bf16.msra.mxu0 0
    %156 = vmatprep.subr.bf16.mxu0 0
    %157 = vmatpush1.bf16.msra.mxu0 0
    %158 = vmatprep.subr.bf16.mxu0 0
    %159 = vmatpush1.bf16.msra.mxu0 0
    %160 = vmatprep.subr.bf16.mxu0 0
    %161 = vmatpush1.bf16.msra.mxu0 0
    %162 = vmatprep.subr.bf16.mxu0 0
    %163 = vmatpush1.bf16.msra.mxu0 0
    %164 = vmatprep.subr.bf16.mxu0 0
    %165 = vmatpush1.bf16.msra.mxu0 0
    %166 = vmatprep.subr.bf16.mxu0 0
    %167 = vmatpush1.bf16.msra.mxu0 0
    %168 = vmatprep.mubr.bf16.mxu0 0
    %169 = vmatmul.mubr.bf16.gmra.mrb[0].mxu0 %v121
    %v170 = vpop.f32.mrb[0].mxu0
    %v171 = vadd.f32 0.0, %v170
    %v172 = vpop.f32.mrb[0].mxu0
    %v173 = vadd.f32 0.0, %v172
    %v174 = vpop.f32.mrb[0].mxu0
    %v175 = vpop.f32.mrb[0].mxu0
    %176 = vdwg.mxu0
    %177 = vmatprep.subr.bf16.mxu0 %v134
    %178 = vmatpush1.bf16.msra.mxu0 %v131
    %179 = vmatprep.subr.bf16.mxu0 0
    %180 = vmatpush1.bf16.msra.mxu0 0
    %181 = vmatprep.subr.bf16.mxu0 0
    %182 = vmatpush1.bf16.msra.mxu0 0
    %183 = vmatprep.subr.bf16.mxu0 0
    %184 = vmatpush1.bf16.msra.mxu0 0
    %185 = vmatprep.subr.bf16.mxu0 0
    %186 = vmatpush1.bf16.msra.mxu0 0
    %187 = vmatprep.subr.bf16.mxu0 0
    %188 = vmatpush1.bf16.msra.mxu0 0
    %189 = vmatprep.subr.bf16.mxu0 0
    %190 = vmatpush1.bf16.msra.mxu0 0
    %191 = vmatprep.subr.bf16.mxu0 0
    %192 = vmatpush1.bf16.msra.mxu0 0
    %193 = vmatprep.subr.bf16.mxu0 0
    %194 = vmatpush1.bf16.msra.mxu0 0
    %195 = vmatprep.subr.bf16.mxu0 0
    %196 = vmatpush1.bf16.msra.mxu0 0
    %197 = vmatprep.subr.bf16.mxu0 0
    %198 = vmatpush1.bf16.msra.mxu0 0
    %199 = vmatprep.subr.bf16.mxu0 0
    %200 = vmatpush1.bf16.msra.mxu0 0
    %201 = vmatprep.subr.bf16.mxu0 0
    %202 = vmatpush1.bf16.msra.mxu0 0
    %203 = vmatprep.subr.bf16.mxu0 0
    %204 = vmatpush1.bf16.msra.mxu0 0
    %205 = vmatprep.subr.bf16.mxu0 0
    %206 = vmatpush1.bf16.msra.mxu0 0
    %207 = vmatprep.subr.bf16.mxu0 0
    %208 = vmatpush1.bf16.msra.mxu0 0
    %209 = vmatprep.mubr.bf16.mxu0 0
    %210 = vmatmul.mubr.bf16.gmra.mrb[0].mxu0 %v121
    %v211 = vpop.f32.mrb[0].mxu0
    %v212 = vadd.f32 0.0, %v211
    %v213 = vpop.f32.mrb[0].mxu0
    %v214 = vadd.f32 0.0, %v213
    %v215 = vpop.f32.mrb[0].mxu0
    %v216 = vpop.f32.mrb[0].mxu0
    %217 = vdwg.mxu0
    %v224 = vunpack.c.l.b16 %v101
    %v225 = vunpack.c.h.b16 %v101
    %v226 = vunpack.c.l.b16 %v102
    %v227 = vunpack.c.h.b16 %v102
    %v228 = vunpack.c.l.b16 %v103
    %v229 = vunpack.c.h.b16 %v103
    %v230 = vunpack.c.l.b16 %v104
    %v231 = vunpack.c.h.b16 %v104
    %v232 = vunpack.c.l.b16 %v105
    %v233 = vunpack.c.h.b16 %v105
    %v234 = vunpack.c.l.b16 %v106
    %v235 = vunpack.c.h.b16 %v106
    %v236 = vpack.c.b16 %v228, %v224
    %v237 = vpack.c.b16 %v229, %v225
    %v238 = vpack.c.b16 %v230, %v226
    %v239 = vpack.c.b16 %v231, %v227
    %v240 = vpack.c.b16 %v232, %v232
    %v241 = vpack.c.b16 %v233, %v233
    %v242 = vpack.c.b16 %v234, %v234
    %v243 = vpack.c.b16 %v235, %v235
    %vm248 = vcmask 138240
    %v250 = vsel %vm248, %v98, 0
    %vm252 = vcmask 1040384
    %v253 = vsel 0, 4294967295, 65535
    %v254 = vsel %vm252, %v253, 0
    %v256 = vand.u32 %v240, %v254
    %v259 = vand.u32 %v241, %v254
    %v262 = vand.u32 %v242, %v254
    %v265 = vand.u32 %v243, %v254
    %267 = vmatprep.subr.bf16.mxu0 %v237
    %268 = vmatpush1.bf16.msra.mxu0 %v236
    %269 = vmatprep.subr.bf16.mxu0 %v259
    %270 = vmatpush1.bf16.msra.mxu0 %v256
    %271 = vmatprep.subr.bf16.mxu0 0
    %272 = vmatpush1.bf16.msra.mxu0 0
    %273 = vmatprep.subr.bf16.mxu0 0
    %274 = vmatpush1.bf16.msra.mxu0 0
    %275 = vmatprep.subr.bf16.mxu0 0
    %276 = vmatpush1.bf16.msra.mxu0 0
    %277 = vmatprep.subr.bf16.mxu0 0
    %278 = vmatpush1.bf16.msra.mxu0 0
    %279 = vmatprep.subr.bf16.mxu0 0
    %280 = vmatpush1.bf16.msra.mxu0 0
    %281 = vmatprep.subr.bf16.mxu0 0
    %282 = vmatpush1.bf16.msra.mxu0 0
    %283 = vmatprep.subr.bf16.mxu0 0
    %284 = vmatpush1.bf16.msra.mxu0 0
    %285 = vmatprep.subr.bf16.mxu0 0
    %286 = vmatpush1.bf16.msra.mxu0 0
    %287 = vmatprep.subr.bf16.mxu0 0
    %288 = vmatpush1.bf16.msra.mxu0 0
    %289 = vmatprep.subr.bf16.mxu0 0
    %290 = vmatpush1.bf16.msra.mxu0 0
    %291 = vmatprep.subr.bf16.mxu0 0
    %292 = vmatpush1.bf16.msra.mxu0 0
    %293 = vmatprep.subr.bf16.mxu0 0
    %294 = vmatpush1.bf16.msra.mxu0 0
    %295 = vmatprep.subr.bf16.mxu0 0
    %296 = vmatpush1.bf16.msra.mxu0 0
    %297 = vmatprep.subr.bf16.mxu0 0
    %298 = vmatpush1.bf16.msra.mxu0 0
    %299 = vmatprep.mubr.bf16.mxu0 0
    %300 = vmatmul.mubr.bf16.gmra.mrb[0].mxu0 %v250
    %v301 = vpop.f32.mrb[0].mxu0
    %v302 = vadd.f32 %v171, %v301
    %v303 = vpop.f32.mrb[0].mxu0
    %v304 = vadd.f32 %v173, %v303
    %v305 = vpop.f32.mrb[0].mxu0
    %v306 = vpop.f32.mrb[0].mxu0
    %307 = vdwg.mxu0
    %308 = vmatprep.subr.bf16.mxu0 %v239
    %309 = vmatpush1.bf16.msra.mxu0 %v238
    %310 = vmatprep.subr.bf16.mxu0 %v265
    %311 = vmatpush1.bf16.msra.mxu0 %v262
    %312 = vmatprep.subr.bf16.mxu0 0
    %313 = vmatpush1.bf16.msra.mxu0 0
    %314 = vmatprep.subr.bf16.mxu0 0
    %315 = vmatpush1.bf16.msra.mxu0 0
    %316 = vmatprep.subr.bf16.mxu0 0
    %317 = vmatpush1.bf16.msra.mxu0 0
    %318 = vmatprep.subr.bf16.mxu0 0
    %319 = vmatpush1.bf16.msra.mxu0 0
    %320 = vmatprep.subr.bf16.mxu0 0
    %321 = vmatpush1.bf16.msra.mxu0 0
    %322 = vmatprep.subr.bf16.mxu0 0
    %323 = vmatpush1.bf16.msra.mxu0 0
    %324 = vmatprep.subr.bf16.mxu0 0
    %325 = vmatpush1.bf16.msra.mxu0 0
    %326 = vmatprep.subr.bf16.mxu0 0
    %327 = vmatpush1.bf16.msra.mxu0 0
    %328 = vmatprep.subr.bf16.mxu0 0
    %329 = vmatpush1.bf16.msra.mxu0 0
    %330 = vmatprep.subr.bf16.mxu0 0
    %331 = vmatpush1.bf16.msra.mxu0 0
    %332 = vmatprep.subr.bf16.mxu0 0
    %333 = vmatpush1.bf16.msra.mxu0 0
    %334 = vmatprep.subr.bf16.mxu0 0
    %335 = vmatpush1.bf16.msra.mxu0 0
    %336 = vmatprep.subr.bf16.mxu0 0
    %337 = vmatpush1.bf16.msra.mxu0 0
    %338 = vmatprep.subr.bf16.mxu0 0
    %339 = vmatpush1.bf16.msra.mxu0 0
    %340 = vmatprep.mubr.bf16.mxu0 0
    %341 = vmatmul.mubr.bf16.gmra.mrb[0].mxu0 %v250
    %v342 = vpop.f32.mrb[0].mxu0
    %v343 = vadd.f32 %v212, %v342
    %v344 = vpop.f32.mrb[0].mxu0
    %v345 = vadd.f32 %v214, %v344
    %v346 = vpop.f32.mrb[0].mxu0
    %v347 = vpop.f32.mrb[0].mxu0
    %348 = vdwg.mxu0
    %v349 = vld [vmem:[%s4] sm:$0xf]
    %v351 = vlaneseq
    %v352 = vshrl.u32 %v351, 7
    %v353 = vsub.s32 0, %v352
    %v354 = vrot.slane %v349, %v353
    %v355 = vlaneseq
    %v356 = vshrl.u32 %v355, 7
    %v357 = vsub.s32 1, %v356
    %v358 = vrot.slane %v349, %v357
    %v359 = vlaneseq
    %v360 = vshrl.u32 %v359, 7
    %v361 = vsub.s32 2, %v360
    %v362 = vrot.slane %v349, %v361
    %v363 = vlaneseq
    %v364 = vshrl.u32 %v363, 7
    %v365 = vsub.s32 3, %v364
    %v366 = vrot.slane %v349, %v365
    %v371 = vadd.f32 %v302, %v354
    %v372 = vadd.f32 %v304, %v358
    %v373 = vadd.f32 %v343, %v362
    %v374 = vadd.f32 %v345, %v366
    %v375 = vmax.f32 %v371, 0.0
    %v376 = vmax.f32 %v372, 0.0
    %v377 = vmax.f32 %v373, 0.0
    %v378 = vmax.f32 %v374, 0.0
    %v379 = vpack.c.bf16 %v375, %v375
    %v380 = vpack.c.bf16 %v376, %v376
    %v381 = vpack.c.bf16 %v377, %v377
    %v382 = vpack.c.bf16 %v378, %v378
    %v383 = vld [vmem:[#allocation10] sm:$0xff]
    %v384 = vld [vmem:[#allocation10 + $0x8] sm:$0xf]
    %v385 = vld [vmem:[#allocation10 + $0xc] sm:$0xff]
    %v386 = vld [vmem:[#allocation10 + $0x14] sm:$0xf]
    %v387 = vld [vmem:[#allocation10 + $0x18] sm:$0xff]
    %v388 = vld [vmem:[#allocation10 + $0x20] sm:$0xf]
    %v389 = vld [vmem:[#allocation10 + $0x24] sm:$0xff]
    %v390 = vld [vmem:[#allocation10 + $0x2c] sm:$0xf]
    %v391 = vld [vmem:[#allocation10 + $0x30] sm:$0xff]
    %v392 = vld [vmem:[#allocation10 + $0x38] sm:$0xf]
    %v393 = vld [vmem:[#allocation10 + $0x3c] sm:$0xff]
    %v394 = vld [vmem:[#allocation10 + $0x44] sm:$0xf]
    %v395 = vld [vmem:[#allocation10 + $0x48] sm:$0xff]
    %v396 = vld [vmem:[#allocation10 + $0x50] sm:$0xf]
    %v397 = vld [vmem:[#allocation10 + $0x54] sm:$0xff]
    %v398 = vld [vmem:[#allocation10 + $0x5c] sm:$0xf]
    %v399 = vld [vmem:[#allocation10 + $0x60] sm:$0xff]
    %v400 = vld [vmem:[#allocation10 + $0x68] sm:$0xf]
    %v401 = vld [vmem:[#allocation10 + $0x6c] sm:$0xff]
    %v402 = vld [vmem:[#allocation10 + $0x74] sm:$0xf]
    %v403 = vld [vmem:[#allocation10 + $0x78] sm:$0xff]
    %v404 = vld [vmem:[#allocation10 + $0x80] sm:$0xf]
    %v405 = vld [vmem:[#allocation10 + $0x84] sm:$0xff]
    %v406 = vld [vmem:[#allocation10 + $0x8c] sm:$0xf]
    %v407 = vld [vmem:[#allocation10 + $0x90] sm:$0xff]
    %v408 = vld [vmem:[#allocation10 + $0x98] sm:$0xf]
    %v409 = vld [vmem:[#allocation10 + $0x9c] sm:$0xff]
    %v410 = vld [vmem:[#allocation10 + $0xa4] sm:$0xf]
    %v411 = vld [vmem:[#allocation10 + $0xa8] sm:$0xff]
    %v412 = vld [vmem:[#allocation10 + $0xb0] sm:$0xf]
    %v413 = vld [vmem:[#allocation10 + $0xb4] sm:$0xff]
    %v414 = vld [vmem:[#allocation10 + $0xbc] sm:$0xf]
    %v415 = vld [vmem:[#allocation10 + $0xc0] sm:$0xff]
    %v416 = vld [vmem:[#allocation10 + $0xc8] sm:$0xf]
    %v417 = vld [vmem:[#allocation10 + $0xcc] sm:$0xff]
    %v418 = vld [vmem:[#allocation10 + $0xd4] sm:$0xf]
    %v419 = vld [vmem:[#allocation10 + $0xd8] sm:$0xff]
    %v420 = vld [vmem:[#allocation10 + $0xe0] sm:$0xf]
    %v421 = vld [vmem:[#allocation10 + $0xe4] sm:$0xff]
    %v422 = vld [vmem:[#allocation10 + $0xec] sm:$0xf]
    %v423 = vld [vmem:[#allocation10 + $0xf0] sm:$0xff]
    %v424 = vld [vmem:[#allocation10 + $0xf8] sm:$0xf]
    %v425 = vld [vmem:[#allocation10 + $0xfc] sm:$0xff]
    %v426 = vld [vmem:[#allocation10 + $0x104] sm:$0xf]
    %v427 = vld [vmem:[#allocation10 + $0x108] sm:$0xff]
    %v428 = vld [vmem:[#allocation10 + $0x110] sm:$0xf]
    %v429 = vld [vmem:[#allocation10 + $0x114] sm:$0xff]
    %v430 = vld [vmem:[#allocation10 + $0x11c] sm:$0xf]
    %v431 = vld [vmem:[#allocation10 + $0x120] sm:$0xff]
    %v432 = vld [vmem:[#allocation10 + $0x128] sm:$0xf]
    %v433 = vld [vmem:[#allocation10 + $0x12c] sm:$0xff]
    %v434 = vld [vmem:[#allocation10 + $0x134] sm:$0xf]
    %v435 = vld [vmem:[#allocation10 + $0x138] sm:$0xff]
    %v436 = vld [vmem:[#allocation10 + $0x140] sm:$0xf]
    %v437 = vld [vmem:[#allocation10 + $0x144] sm:$0xff]
    %v438 = vld [vmem:[#allocation10 + $0x14c] sm:$0xf]
    %v439 = vld [vmem:[#allocation10 + $0x150] sm:$0xff]
    %v440 = vld [vmem:[#allocation10 + $0x158] sm:$0xf]
    %v441 = vld [vmem:[#allocation10 + $0x15c] sm:$0xff]
    %v442 = vld [vmem:[#allocation10 + $0x164] sm:$0xf]
    %v443 = vld [vmem:[#allocation10 + $0x168] sm:$0xff]
    %v444 = vld [vmem:[#allocation10 + $0x170] sm:$0xf]
    %v445 = vld [vmem:[#allocation10 + $0x174] sm:$0xff]
    %v446 = vld [vmem:[#allocation10 + $0x17c] sm:$0xf]
    %v447 = vld [vmem:[#allocation10 + $0x180] sm:$0xff]
    %v448 = vld [vmem:[#allocation10 + $0x188] sm:$0xf]
    %v449 = vld [vmem:[#allocation10 + $0x18c] sm:$0xff]
    %v450 = vld [vmem:[#allocation10 + $0x194] sm:$0xf]
    %v451 = vld [vmem:[#allocation10 + $0x198] sm:$0xff]
    %v452 = vld [vmem:[#allocation10 + $0x1a0] sm:$0xf]
    %v453 = vld [vmem:[#allocation10 + $0x1a4] sm:$0xff]
    %v454 = vld [vmem:[#allocation10 + $0x1ac] sm:$0xf]
    %v455 = vld [vmem:[#allocation10 + $0x1b0] sm:$0xff]
    %v456 = vld [vmem:[#allocation10 + $0x1b8] sm:$0xf]
    %v457 = vld [vmem:[#allocation10 + $0x1bc] sm:$0xff]
    %v458 = vld [vmem:[#allocation10 + $0x1c4] sm:$0xf]
    %v459 = vld [vmem:[#allocation10 + $0x1c8] sm:$0xff]
    %v460 = vld [vmem:[#allocation10 + $0x1d0] sm:$0xf]
    %v461 = vld [vmem:[#allocation10 + $0x1d4] sm:$0xff]
    %v462 = vld [vmem:[#allocation10 + $0x1dc] sm:$0xf]
    %v463 = vld [vmem:[#allocation10 + $0x1e0] sm:$0xff]
    %v464 = vld [vmem:[#allocation10 + $0x1e8] sm:$0xf]
    %v465 = vld [vmem:[#allocation10 + $0x1ec] sm:$0xff]
    %v466 = vld [vmem:[#allocation10 + $0x1f4] sm:$0xf]
    %v467 = vld [vmem:[#allocation10 + $0x1f8] sm:$0xff]
    %v468 = vld [vmem:[#allocation10 + $0x200] sm:$0xf]
    %v469 = vld [vmem:[#allocation10 + $0x204] sm:$0xff]
    %v470 = vld [vmem:[#allocation10 + $0x20c] sm:$0xf]
    %v471 = vld [vmem:[#allocation10 + $0x210] sm:$0xff]
    %v472 = vld [vmem:[#allocation10 + $0x218] sm:$0xf]
    %v473 = vld [vmem:[#allocation10 + $0x21c] sm:$0xff]
    %v474 = vld [vmem:[#allocation10 + $0x224] sm:$0xf]
    %v475 = vld [vmem:[#allocation10 + $0x228] sm:$0xff]
    %v476 = vld [vmem:[#allocation10 + $0x230] sm:$0xf]
    %v477 = vld [vmem:[#allocation10 + $0x234] sm:$0xff]
    %v478 = vld [vmem:[#allocation10 + $0x23c] sm:$0xf]
    %v479 = vld [vmem:[#allocation10 + $0x240] sm:$0xff]
    %v480 = vld [vmem:[#allocation10 + $0x248] sm:$0xf]
    %v481 = vld [vmem:[#allocation10 + $0x24c] sm:$0xff]
    %v482 = vld [vmem:[#allocation10 + $0x254] sm:$0xf]
    %v483 = vld [vmem:[#allocation10 + $0x258] sm:$0xff]
    %v484 = vld [vmem:[#allocation10 + $0x260] sm:$0xf]
    %v485 = vld [vmem:[#allocation10 + $0x264] sm:$0xff]
    %v486 = vld [vmem:[#allocation10 + $0x26c] sm:$0xf]
    %v487 = vld [vmem:[#allocation10 + $0x270] sm:$0xff]
    %v488 = vld [vmem:[#allocation10 + $0x278] sm:$0xf]
    %v489 = vld [vmem:[#allocation10 + $0x27c] sm:$0xff]
    %v490 = vld [vmem:[#allocation10 + $0x284] sm:$0xf]
    %v491 = vld [vmem:[#allocation10 + $0x288] sm:$0xff]
    %v492 = vld [vmem:[#allocation10 + $0x290] sm:$0xf]
    %v493 = vld [vmem:[#allocation10 + $0x294] sm:$0xff]
    %v494 = vld [vmem:[#allocation10 + $0x29c] sm:$0xf]
    %v495 = vld [vmem:[#allocation10 + $0x2a0] sm:$0xff]
    %v496 = vld [vmem:[#allocation10 + $0x2a8] sm:$0xf]
    %v497 = vld [vmem:[#allocation10 + $0x2ac] sm:$0xff]
    %v498 = vld [vmem:[#allocation10 + $0x2b4] sm:$0xf]
    %v499 = vld [vmem:[#allocation10 + $0x2b8] sm:$0xff]
    %v500 = vld [vmem:[#allocation10 + $0x2c0] sm:$0xf]
    %v501 = vld [vmem:[#allocation10 + $0x2c4] sm:$0xff]
    %v502 = vld [vmem:[#allocation10 + $0x2cc] sm:$0xf]
    %v503 = vld [vmem:[#allocation10 + $0x2d0] sm:$0xff]
    %v504 = vld [vmem:[#allocation10 + $0x2d8] sm:$0xf]
    %v505 = vld [vmem:[#allocation10 + $0x2dc] sm:$0xff]
    %v506 = vld [vmem:[#allocation10 + $0x2e4] sm:$0xf]
    %v507 = vld [vmem:[#allocation10 + $0x2e8] sm:$0xff]
    %v508 = vld [vmem:[#allocation10 + $0x2f0] sm:$0xf]
    %v509 = vld [vmem:[#allocation10 + $0x2f4] sm:$0xff]
    %v510 = vld [vmem:[#allocation10 + $0x2fc] sm:$0xf]
    %v511 = vld [vmem:[%s6] sm:$0x7]
    %v513 = vlaneseq
    %v514 = vshrl.u32 %v513, 7
    %v515 = vsub.s32 0, %v514
    %v516 = vrot.slane %v511, %v515
    %v517 = vlaneseq
    %v518 = vshrl.u32 %v517, 7
    %v519 = vsub.s32 1, %v518
    %v520 = vrot.slane %v511, %v519
    %v521 = vlaneseq
    %v522 = vshrl.u32 %v521, 7
    %v523 = vsub.s32 2, %v522
    %v524 = vrot.slane %v511, %v523
    %v656 = vunpack.c.l.b16 %v383
    %v657 = vunpack.c.h.b16 %v383
    %v658 = vunpack.c.l.b16 %v384
    %v659 = vunpack.c.l.b16 %v385
    %v660 = vunpack.c.h.b16 %v385
    %v661 = vunpack.c.l.b16 %v386
    %v662 = vunpack.c.l.b16 %v387
    %v663 = vunpack.c.h.b16 %v387
    %v664 = vunpack.c.l.b16 %v388
    %v665 = vunpack.c.l.b16 %v389
    %v666 = vunpack.c.h.b16 %v389
    %v667 = vunpack.c.l.b16 %v390
    %v668 = vunpack.c.l.b16 %v391
    %v669 = vunpack.c.h.b16 %v391
    %v670 = vunpack.c.l.b16 %v392
    %v671 = vunpack.c.l.b16 %v393
    %v672 = vunpack.c.h.b16 %v393
    %v673 = vunpack.c.l.b16 %v394
    %v674 = vunpack.c.l.b16 %v395
    %v675 = vunpack.c.h.b16 %v395
    %v676 = vunpack.c.l.b16 %v396
    %v677 = vunpack.c.l.b16 %v397
    %v678 = vunpack.c.h.b16 %v397
    %v679 = vunpack.c.l.b16 %v398
    %v680 = vunpack.c.l.b16 %v399
    %v681 = vunpack.c.h.b16 %v399
    %v682 = vunpack.c.l.b16 %v400
    %v683 = vunpack.c.l.b16 %v401
    %v684 = vunpack.c.h.b16 %v401
    %v685 = vunpack.c.l.b16 %v402
    %v686 = vunpack.c.l.b16 %v403
    %v687 = vunpack.c.h.b16 %v403
    %v688 = vunpack.c.l.b16 %v404
    %v689 = vunpack.c.l.b16 %v405
    %v690 = vunpack.c.h.b16 %v405
    %v691 = vunpack.c.l.b16 %v406
    %v692 = vunpack.c.l.b16 %v407
    %v693 = vunpack.c.h.b16 %v407
    %v694 = vunpack.c.l.b16 %v408
    %v695 = vunpack.c.l.b16 %v409
    %v696 = vunpack.c.h.b16 %v409
    %v697 = vunpack.c.l.b16 %v410
    %v698 = vunpack.c.l.b16 %v411
    %v699 = vunpack.c.h.b16 %v411
    %v700 = vunpack.c.l.b16 %v412
    %v701 = vunpack.c.l.b16 %v413
    %v702 = vunpack.c.h.b16 %v413
    %v703 = vunpack.c.l.b16 %v414
    %v704 = vunpack.c.l.b16 %v415
    %v705 = vunpack.c.h.b16 %v415
    %v706 = vunpack.c.l.b16 %v416
    %v707 = vunpack.c.l.b16 %v417
    %v708 = vunpack.c.h.b16 %v417
    %v709 = vunpack.c.l.b16 %v418
    %v710 = vunpack.c.l.b16 %v419
    %v711 = vunpack.c.h.b16 %v419
    %v712 = vunpack.c.l.b16 %v420
    %v713 = vunpack.c.l.b16 %v421
    %v714 = vunpack.c.h.b16 %v421
    %v715 = vunpack.c.l.b16 %v422
    %v716 = vunpack.c.l.b16 %v423
    %v717 = vunpack.c.h.b16 %v423
    %v718 = vunpack.c.l.b16 %v424
    %v719 = vunpack.c.l.b16 %v425
    %v720 = vunpack.c.h.b16 %v425
    %v721 = vunpack.c.l.b16 %v426
    %v722 = vunpack.c.l.b16 %v427
    %v723 = vunpack.c.h.b16 %v427
    %v724 = vunpack.c.l.b16 %v428
    %v725 = vunpack.c.l.b16 %v429
    %v726 = vunpack.c.h.b16 %v429
    %v727 = vunpack.c.l.b16 %v430
    %v728 = vunpack.c.l.b16 %v431
    %v729 = vunpack.c.h.b16 %v431
    %v730 = vunpack.c.l.b16 %v432
    %v731 = vunpack.c.l.b16 %v433
    %v732 = vunpack.c.h.b16 %v433
    %v733 = vunpack.c.l.b16 %v434
    %v734 = vunpack.c.l.b16 %v435
    %v735 = vunpack.c.h.b16 %v435
    %v736 = vunpack.c.l.b16 %v436
    %v737 = vunpack.c.l.b16 %v437
    %v738 = vunpack.c.h.b16 %v437
    %v739 = vunpack.c.l.b16 %v438
    %v740 = vunpack.c.l.b16 %v439
    %v741 = vunpack.c.h.b16 %v439
    %v742 = vunpack.c.l.b16 %v440
    %v743 = vunpack.c.l.b16 %v441
    %v744 = vunpack.c.h.b16 %v441
    %v745 = vunpack.c.l.b16 %v442
    %v746 = vunpack.c.l.b16 %v443
    %v747 = vunpack.c.h.b16 %v443
    %v748 = vunpack.c.l.b16 %v444
    %v749 = vunpack.c.l.b16 %v445
    %v750 = vunpack.c.h.b16 %v445
    %v751 = vunpack.c.l.b16 %v446
    %v752 = vunpack.c.l.b16 %v447
    %v753 = vunpack.c.h.b16 %v447
    %v754 = vunpack.c.l.b16 %v448
    %v755 = vunpack.c.l.b16 %v449
    %v756 = vunpack.c.h.b16 %v449
    %v757 = vunpack.c.l.b16 %v450
    %v758 = vunpack.c.l.b16 %v451
    %v759 = vunpack.c.h.b16 %v451
    %v760 = vunpack.c.l.b16 %v452
    %v761 = vunpack.c.l.b16 %v453
    %v762 = vunpack.c.h.b16 %v453
    %v763 = vunpack.c.l.b16 %v454
    %v764 = vunpack.c.l.b16 %v455
    %v765 = vunpack.c.h.b16 %v455
    %v766 = vunpack.c.l.b16 %v456
    %v767 = vunpack.c.l.b16 %v457
    %v768 = vunpack.c.h.b16 %v457
    %v769 = vunpack.c.l.b16 %v458
    %v770 = vunpack.c.l.b16 %v459
    %v771 = vunpack.c.h.b16 %v459
    %v772 = vunpack.c.l.b16 %v460
    %v773 = vunpack.c.l.b16 %v461
    %v774 = vunpack.c.h.b16 %v461
    %v775 = vunpack.c.l.b16 %v462
    %v776 = vunpack.c.l.b16 %v463
    %v777 = vunpack.c.h.b16 %v463
    %v778 = vunpack.c.l.b16 %v464
    %v779 = vunpack.c.l.b16 %v465
    %v780 = vunpack.c.h.b16 %v465
    %v781 = vunpack.c.l.b16 %v466
    %v782 = vunpack.c.l.b16 %v467
    %v783 = vunpack.c.h.b16 %v467
    %v784 = vunpack.c.l.b16 %v468
    %v785 = vunpack.c.l.b16 %v469
    %v786 = vunpack.c.h.b16 %v469
    %v787 = vunpack.c.l.b16 %v470
    %v788 = vunpack.c.l.b16 %v471
    %v789 = vunpack.c.h.b16 %v471
    %v790 = vunpack.c.l.b16 %v472
    %v791 = vunpack.c.l.b16 %v473
    %v792 = vunpack.c.h.b16 %v473
    %v793 = vunpack.c.l.b16 %v474
    %v794 = vunpack.c.l.b16 %v475
    %v795 = vunpack.c.h.b16 %v475
    %v796 = vunpack.c.l.b16 %v476
    %v797 = vunpack.c.l.b16 %v477
    %v798 = vunpack.c.h.b16 %v477
    %v799 = vunpack.c.l.b16 %v478
    %v800 = vunpack.c.l.b16 %v479
    %v801 = vunpack.c.h.b16 %v479
    %v802 = vunpack.c.l.b16 %v480
    %v803 = vunpack.c.l.b16 %v481
    %v804 = vunpack.c.h.b16 %v481
    %v805 = vunpack.c.l.b16 %v482
    %v806 = vunpack.c.l.b16 %v483
    %v807 = vunpack.c.h.b16 %v483
    %v808 = vunpack.c.l.b16 %v484
    %v809 = vunpack.c.l.b16 %v485
    %v810 = vunpack.c.h.b16 %v485
    %v811 = vunpack.c.l.b16 %v486
    %v812 = vunpack.c.l.b16 %v487
    %v813 = vunpack.c.h.b16 %v487
    %v814 = vunpack.c.l.b16 %v488
    %v815 = vunpack.c.l.b16 %v489
    %v816 = vunpack.c.h.b16 %v489
    %v817 = vunpack.c.l.b16 %v490
    %v818 = vunpack.c.l.b16 %v491
    %v819 = vunpack.c.h.b16 %v491
    %v820 = vunpack.c.l.b16 %v492
    %v821 = vunpack.c.l.b16 %v493
    %v822 = vunpack.c.h.b16 %v493
    %v823 = vunpack.c.l.b16 %v494
    %v824 = vunpack.c.l.b16 %v495
    %v825 = vunpack.c.h.b16 %v495
    %v826 = vunpack.c.l.b16 %v496
    %v827 = vunpack.c.l.b16 %v497
    %v828 = vunpack.c.h.b16 %v497
    %v829 = vunpack.c.l.b16 %v498
    %v830 = vunpack.c.l.b16 %v499
    %v831 = vunpack.c.h.b16 %v499
    %v832 = vunpack.c.l.b16 %v500
    %v833 = vunpack.c.l.b16 %v501
    %v834 = vunpack.c.h.b16 %v501
    %v835 = vunpack.c.l.b16 %v502
    %v836 = vunpack.c.l.b16 %v503
    %v837 = vunpack.c.h.b16 %v503
    %v838 = vunpack.c.l.b16 %v504
    %v839 = vunpack.c.l.b16 %v505
    %v840 = vunpack.c.h.b16 %v505
    %v841 = vunpack.c.l.b16 %v506
    %v842 = vunpack.c.l.b16 %v507
    %v843 = vunpack.c.h.b16 %v507
    %v844 = vunpack.c.l.b16 %v508
    %v845 = vunpack.c.l.b16 %v509
    %v846 = vunpack.c.h.b16 %v509
    %v847 = vunpack.c.l.b16 %v510
    %v848 = vpack.c.b16 %v659, %v656
    %v849 = vpack.c.b16 %v660, %v657
    %v850 = vpack.c.b16 %v661, %v658
    %v851 = vpack.c.b16 %v665, %v662
    %v852 = vpack.c.b16 %v666, %v663
    %v853 = vpack.c.b16 %v667, %v664
    %v854 = vpack.c.b16 %v671, %v668
    %v855 = vpack.c.b16 %v672, %v669
    %v856 = vpack.c.b16 %v673, %v670
    %v857 = vpack.c.b16 %v677, %v674
    %v858 = vpack.c.b16 %v678, %v675
    %v859 = vpack.c.b16 %v679, %v676
    %v860 = vpack.c.b16 %v683, %v680
    %v861 = vpack.c.b16 %v684, %v681
    %v862 = vpack.c.b16 %v685, %v682
    %v863 = vpack.c.b16 %v689, %v686
    %v864 = vpack.c.b16 %v690, %v687
    %v865 = vpack.c.b16 %v691, %v688
    %v866 = vpack.c.b16 %v695, %v692
    %v867 = vpack.c.b16 %v696, %v693
    %v868 = vpack.c.b16 %v697, %v694
    %v869 = vpack.c.b16 %v701, %v698
    %v870 = vpack.c.b16 %v702, %v699
    %v871 = vpack.c.b16 %v703, %v700
    %v872 = vpack.c.b16 %v707, %v704
    %v873 = vpack.c.b16 %v708, %v705
    %v874 = vpack.c.b16 %v709, %v706
    %v875 = vpack.c.b16 %v713, %v710
    %v876 = vpack.c.b16 %v714, %v711
    %v877 = vpack.c.b16 %v715, %v712
    %v878 = vpack.c.b16 %v719, %v716
    %v879 = vpack.c.b16 %v720, %v717
    %v880 = vpack.c.b16 %v721, %v718
    %v881 = vpack.c.b16 %v725, %v722
    %v882 = vpack.c.b16 %v726, %v723
    %v883 = vpack.c.b16 %v727, %v724
    %v884 = vpack.c.b16 %v731, %v728
    %v885 = vpack.c.b16 %v732, %v729
    %v886 = vpack.c.b16 %v733, %v730
    %v887 = vpack.c.b16 %v737, %v734
    %v888 = vpack.c.b16 %v738, %v735
    %v889 = vpack.c.b16 %v739, %v736
    %v890 = vpack.c.b16 %v743, %v740
    %v891 = vpack.c.b16 %v744, %v741
    %v892 = vpack.c.b16 %v745, %v742
    %v893 = vpack.c.b16 %v749, %v746
    %v894 = vpack.c.b16 %v750, %v747
    %v895 = vpack.c.b16 %v751, %v748
    %v896 = vpack.c.b16 %v755, %v752
    %v897 = vpack.c.b16 %v756, %v753
    %v898 = vpack.c.b16 %v757, %v754
    %v899 = vpack.c.b16 %v761, %v758
    %v900 = vpack.c.b16 %v762, %v759
    %v901 = vpack.c.b16 %v763, %v760
    %v902 = vpack.c.b16 %v767, %v764
    %v903 = vpack.c.b16 %v768, %v765
    %v904 = vpack.c.b16 %v769, %v766
    %v905 = vpack.c.b16 %v773, %v770
    %v906 = vpack.c.b16 %v774, %v771
    %v907 = vpack.c.b16 %v775, %v772
    %v908 = vpack.c.b16 %v779, %v776
    %v909 = vpack.c.b16 %v780, %v777
    %v910 = vpack.c.b16 %v781, %v778
    %v911 = vpack.c.b16 %v785, %v782
    %v912 = vpack.c.b16 %v786, %v783
    %v913 = vpack.c.b16 %v787, %v784
    %v914 = vpack.c.b16 %v791, %v788
    %v915 = vpack.c.b16 %v792, %v789
    %v916 = vpack.c.b16 %v793, %v790
    %v917 = vpack.c.b16 %v797, %v794
    %v918 = vpack.c.b16 %v798, %v795
    %v919 = vpack.c.b16 %v799, %v796
    %v920 = vpack.c.b16 %v803, %v800
    %v921 = vpack.c.b16 %v804, %v801
    %v922 = vpack.c.b16 %v805, %v802
    %v923 = vpack.c.b16 %v809, %v806
    %v924 = vpack.c.b16 %v810, %v807
    %v925 = vpack.c.b16 %v811, %v808
    %v926 = vpack.c.b16 %v815, %v812
    %v927 = vpack.c.b16 %v816, %v813
    %v928 = vpack.c.b16 %v817, %v814
    %v929 = vpack.c.b16 %v821, %v818
    %v930 = vpack.c.b16 %v822, %v819
    %v931 = vpack.c.b16 %v823, %v820
    %v932 = vpack.c.b16 %v827, %v824
    %v933 = vpack.c.b16 %v828, %v825
    %v934 = vpack.c.b16 %v829, %v826
    %v935 = vpack.c.b16 %v833, %v830
    %v936 = vpack.c.b16 %v834, %v831
    %v937 = vpack.c.b16 %v835, %v832
    %v938 = vpack.c.b16 %v839, %v836
    %v939 = vpack.c.b16 %v840, %v837
    %v940 = vpack.c.b16 %v841, %v838
    %v941 = vpack.c.b16 %v845, %v842
    %v942 = vpack.c.b16 %v846, %v843
    %v943 = vpack.c.b16 %v847, %v844
    %1040 = vmatprep.subr.bf16.mxu0 %v849
    %1041 = vmatpush1.bf16.msra.mxu0 %v848
    %1042 = vmatprep.subr.bf16.mxu0 %v852
    %1043 = vmatpush1.bf16.msra.mxu0 %v851
    %1044 = vmatprep.subr.bf16.mxu0 %v855
    %1045 = vmatpush1.bf16.msra.mxu0 %v854
    %1046 = vmatprep.subr.bf16.mxu0 %v858
    %1047 = vmatpush1.bf16.msra.mxu0 %v857
    %1048 = vmatprep.subr.bf16.mxu0 %v861
    %1049 = vmatpush1.bf16.msra.mxu0 %v860
    %1050 = vmatprep.subr.bf16.mxu0 %v864
    %1051 = vmatpush1.bf16.msra.mxu0 %v863
    %1052 = vmatprep.subr.bf16.mxu0 %v867
    %1053 = vmatpush1.bf16.msra.mxu0 %v866
    %1054 = vmatprep.subr.bf16.mxu0 %v870
    %1055 = vmatpush1.bf16.msra.mxu0 %v869
    %1056 = vmatprep.subr.bf16.mxu0 %v873
    %1057 = vmatpush1.bf16.msra.mxu0 %v872
    %1058 = vmatprep.subr.bf16.mxu0 %v876
    %1059 = vmatpush1.bf16.msra.mxu0 %v875
    %1060 = vmatprep.subr.bf16.mxu0 %v879
    %1061 = vmatpush1.bf16.msra.mxu0 %v878
    %1062 = vmatprep.subr.bf16.mxu0 %v882
    %1063 = vmatpush1.bf16.msra.mxu0 %v881
    %1064 = vmatprep.subr.bf16.mxu0 %v885
    %1065 = vmatpush1.bf16.msra.mxu0 %v884
    %1066 = vmatprep.subr.bf16.mxu0 %v888
    %1067 = vmatpush1.bf16.msra.mxu0 %v887
    %1068 = vmatprep.subr.bf16.mxu0 %v891
    %1069 = vmatpush1.bf16.msra.mxu0 %v890
    %1070 = vmatprep.subr.bf16.mxu0 %v894
    %1071 = vmatpush1.bf16.msra.mxu0 %v893
    %1072 = vmatprep.mubr.bf16.mxu0 %v380
    %1073 = vmatmul.mubr.bf16.gmra.mrb[0].mxu0 %v379
    %v1074 = vpop.f32.mrb[0].mxu0
    %v1075 = vadd.f32 %v516, %v1074
    %v1076 = vpop.f32.mrb[0].mxu0
    %v1077 = vadd.f32 %v520, %v1076
    %v1078 = vpop.f32.mrb[0].mxu0
    %v1079 = vpop.f32.mrb[0].mxu0
    %1080 = vdwg.mxu0
    %1081 = vmatprep.subr.bf16.mxu0 %v897
    %1082 = vmatpush1.bf16.msra.mxu0 %v896
    %1083 = vmatprep.subr.bf16.mxu0 %v900
    %1084 = vmatpush1.bf16.msra.mxu0 %v899
    %1085 = vmatprep.subr.bf16.mxu0 %v903
    %1086 = vmatpush1.bf16.msra.mxu0 %v902
    %1087 = vmatprep.subr.bf16.mxu0 %v906
    %1088 = vmatpush1.bf16.msra.mxu0 %v905
    %1089 = vmatprep.subr.bf16.mxu0 %v909
    %1090 = vmatpush1.bf16.msra.mxu0 %v908
    %1091 = vmatprep.subr.bf16.mxu0 %v912
    %1092 = vmatpush1.bf16.msra.mxu0 %v911
    %1093 = vmatprep.subr.bf16.mxu0 %v915
    %1094 = vmatpush1.bf16.msra.mxu0 %v914
    %1095 = vmatprep.subr.bf16.mxu0 %v918
    %1096 = vmatpush1.bf16.msra.mxu0 %v917
    %1097 = vmatprep.subr.bf16.mxu0 %v921
    %1098 = vmatpush1.bf16.msra.mxu0 %v920
    %1099 = vmatprep.subr.bf16.mxu0 %v924
    %1100 = vmatpush1.bf16.msra.mxu0 %v923
    %1101 = vmatprep.subr.bf16.mxu0 %v927
    %1102 = vmatpush1.bf16.msra.mxu0 %v926
    %1103 = vmatprep.subr.bf16.mxu0 %v930
    %1104 = vmatpush1.bf16.msra.mxu0 %v929
    %1105 = vmatprep.subr.bf16.mxu0 %v933
    %1106 = vmatpush1.bf16.msra.mxu0 %v932
    %1107 = vmatprep.subr.bf16.mxu0 %v936
    %1108 = vmatpush1.bf16.msra.mxu0 %v935
    %1109 = vmatprep.subr.bf16.mxu0 %v939
    %1110 = vmatpush1.bf16.msra.mxu0 %v938
    %1111 = vmatprep.subr.bf16.mxu0 %v942
    %1112 = vmatpush1.bf16.msra.mxu0 %v941
    %1113 = vmatprep.mubr.bf16.mxu0 %v382
    %1114 = vmatmul.mubr.bf16.gmra.mrb[0].mxu0 %v381
    %v1115 = vpop.f32.mrb[0].mxu0
    %v1116 = vadd.f32 %v1075, %v1115
    %v1117 = vpop.f32.mrb[0].mxu0
    %v1118 = vadd.f32 %v1077, %v1117
    %v1119 = vpop.f32.mrb[0].mxu0
    %v1120 = vpop.f32.mrb[0].mxu0
    %1121 = vdwg.mxu0
    %1122 = vmatprep.subr.bf16.mxu0 0
    %1123 = vmatpush1.bf16.msra.mxu0 %v850
    %1124 = vmatprep.subr.bf16.mxu0 0
    %1125 = vmatpush1.bf16.msra.mxu0 %v853
    %1126 = vmatprep.subr.bf16.mxu0 0
    %1127 = vmatpush1.bf16.msra.mxu0 %v856
    %1128 = vmatprep.subr.bf16.mxu0 0
    %1129 = vmatpush1.bf16.msra.mxu0 %v859
    %1130 = vmatprep.subr.bf16.mxu0 0
    %1131 = vmatpush1.bf16.msra.mxu0 %v862
    %1132 = vmatprep.subr.bf16.mxu0 0
    %1133 = vmatpush1.bf16.msra.mxu0 %v865
    %1134 = vmatprep.subr.bf16.mxu0 0
    %1135 = vmatpush1.bf16.msra.mxu0 %v868
    %1136 = vmatprep.subr.bf16.mxu0 0
    %1137 = vmatpush1.bf16.msra.mxu0 %v871
    %1138 = vmatprep.subr.bf16.mxu0 0
    %1139 = vmatpush1.bf16.msra.mxu0 %v874
    %1140 = vmatprep.subr.bf16.mxu0 0
    %1141 = vmatpush1.bf16.msra.mxu0 %v877
    %1142 = vmatprep.subr.bf16.mxu0 0
    %1143 = vmatpush1.bf16.msra.mxu0 %v880
    %1144 = vmatprep.subr.bf16.mxu0 0
    %1145 = vmatpush1.bf16.msra.mxu0 %v883
    %1146 = vmatprep.subr.bf16.mxu0 0
    %1147 = vmatpush1.bf16.msra.mxu0 %v886
    %1148 = vmatprep.subr.bf16.mxu0 0
    %1149 = vmatpush1.bf16.msra.mxu0 %v889
    %1150 = vmatprep.subr.bf16.mxu0 0
    %1151 = vmatpush1.bf16.msra.mxu0 %v892
    %1152 = vmatprep.subr.bf16.mxu0 0
    %1153 = vmatpush1.bf16.msra.mxu0 %v895
    %1154 = vmatprep.mubr.bf16.mxu0 %v380
    %1155 = vmatmul.mubr.bf16.gmra.mrb[0].mxu0 %v379
    %v1156 = vpop.f32.mrb[0].mxu0
    %v1157 = vadd.f32 %v524, %v1156
    %v1158 = vpop.f32.mrb[0].mxu0
    %v1159 = vpop.f32.mrb[0].mxu0
    %v1160 = vpop.f32.mrb[0].mxu0
    %1161 = vdwg.mxu0
    %1162 = vmatprep.subr.bf16.mxu0 0
    %1163 = vmatpush1.bf16.msra.mxu0 %v898
    %1164 = vmatprep.subr.bf16.mxu0 0
    %1165 = vmatpush1.bf16.msra.mxu0 %v901
    %1166 = vmatprep.subr.bf16.mxu0 0
    %1167 = vmatpush1.bf16.msra.mxu0 %v904
    %1168 = vmatprep.subr.bf16.mxu0 0
    %1169 = vmatpush1.bf16.msra.mxu0 %v907
    %1170 = vmatprep.subr.bf16.mxu0 0
    %1171 = vmatpush1.bf16.msra.mxu0 %v910
    %1172 = vmatprep.subr.bf16.mxu0 0
    %1173 = vmatpush1.bf16.msra.mxu0 %v913
    %1174 = vmatprep.subr.bf16.mxu0 0
    %1175 = vmatpush1.bf16.msra.mxu0 %v916
    %1176 = vmatprep.subr.bf16.mxu0 0
    %1177 = vmatpush1.bf16.msra.mxu0 %v919
    %1178 = vmatprep.subr.bf16.mxu0 0
    %1179 = vmatpush1.bf16.msra.mxu0 %v922
    %1180 = vmatprep.subr.bf16.mxu0 0
    %1181 = vmatpush1.bf16.msra.mxu0 %v925
    %1182 = vmatprep.subr.bf16.mxu0 0
    %1183 = vmatpush1.bf16.msra.mxu0 %v928
    %1184 = vmatprep.subr.bf16.mxu0 0
    %1185 = vmatpush1.bf16.msra.mxu0 %v931
    %1186 = vmatprep.subr.bf16.mxu0 0
    %1187 = vmatpush1.bf16.msra.mxu0 %v934
    %1188 = vmatprep.subr.bf16.mxu0 0
    %1189 = vmatpush1.bf16.msra.mxu0 %v937
    %1190 = vmatprep.subr.bf16.mxu0 0
    %1191 = vmatpush1.bf16.msra.mxu0 %v940
    %1192 = vmatprep.subr.bf16.mxu0 0
    %1193 = vmatpush1.bf16.msra.mxu0 %v943
    %1194 = vmatprep.mubr.bf16.mxu0 %v382
    %1195 = vmatmul.mubr.bf16.gmra.mrb[0].mxu0 %v381
    %v1196 = vpop.f32.mrb[0].mxu0
    %v1197 = vadd.f32 %v1157, %v1196
    %v1198 = vpop.f32.mrb[0].mxu0
    %v1199 = vpop.f32.mrb[0].mxu0
    %v1200 = vpop.f32.mrb[0].mxu0
    %1201 = vdwg.mxu0
    %v1202 = vmax.f32 %v1116, 0.0
    %v1203 = vmax.f32 %v1118, 0.0
    %v1204 = vmax.f32 %v1197, 0.0
    %v1205 = vld [vmem:[%s7] sm:$0x7]
    %v1207 = vlaneseq
    %v1208 = vshrl.u32 %v1207, 7
    %v1209 = vsub.s32 0, %v1208
    %v1210 = vrot.slane %v1205, %v1209
    %v1211 = vlaneseq
    %v1212 = vshrl.u32 %v1211, 7
    %v1213 = vsub.s32 1, %v1212
    %v1214 = vrot.slane %v1205, %v1213
    %v1215 = vlaneseq
    %v1216 = vshrl.u32 %v1215, 7
    %v1217 = vsub.s32 2, %v1216
    %v1218 = vrot.slane %v1205, %v1217
    %v1222 = vmul.f32 %v1202, %v1210
    %v1223 = vmul.f32 %v1203, %v1214
    %v1224 = vmul.f32 %v1204, %v1218
    %v1225 = vadd.f32 %v1222, %v1223
    %v1226 = vadd.f32 %v1225, %v1224
    %1227 = vadd.xlane.f32.xlu0 %v1226
    %v1228 = vpop.xlane.xlu0 %1227
    %v1229 = vld [vmem:[#allocation2] sm:$0x1]
    %v1231 = vlaneseq
    %v1232 = vshrl.u32 %v1231, 7
    %v1233 = vsub.s32 0, %v1232
    %v1234 = vrot.slane %v1229, %v1233
    %v1236 = vadd.f32 %v1228, %v1234
    %vm1237 = vcmask 7168
    %1238 = vst.msk [vmem:[%s9] sm:$0xff] %vm1237, %v1236
    // Predicated region
    $region58: #{tpu_custom_call.1} parent=1 // pred_check
      _
    $region59: #{tpu_custom_call.1} parent=1 // pred_check_branch
      %1240 = sbr.rel (0) target = $region61
    $region60: #{tpu_custom_call.1} parent=1 // pred_region
      _
    $region61: #{tpu_custom_call.1} parent=1 // pred_fallthru
      _
    // Predicated region
    $region62: #{tpu_custom_call.1} parent=1 // pred_check
      _
    $region63: #{tpu_custom_call.1} parent=1 // pred_check_branch
      %1242 = sbr.rel (0) target = $region65
    $region64: #{tpu_custom_call.1} parent=1 // pred_region
      _
    $region65: #{tpu_custom_call.1} parent=1 // pred_fallthru
      _
    %1243 = vsyncpa [#allocation4], 1
    %1244 = vsyncpa [#allocation6], 1
    %1245 = vsyncpa [#allocation9], 1

</llo_original>
